<compile_context>
chip_gen: v5e
topology: v5e:2x2
jax: 0.10.0
libtpu: 0.0.40
codegen_flags: <defaults>
</compile_context>

<pallas_src>
import jax
import jax.numpy as jnp
from jax.experimental import pallas as pl
from jax.experimental.pallas import tpu as pltpu


def _complex_score_kernel(h_ref, r_ref, t_ref, out_ref):
    # Tiles are (TILE_E, D): edges on sublanes, hidden dim on lanes.
    h = h_ref[...].astype(jnp.float32)
    r = r_ref[...].astype(jnp.float32)
    t = t_ref[...].astype(jnp.float32)
    half = h.shape[-1] // 2
    rh, ih = h[:, :half], h[:, half:]
    rr, ir = r[:, :half], r[:, half:]
    rt, it = t[:, :half], t[:, half:]
    # Factored ComplEx score (algebraically identical to the 4-term PyTorch form).
    score = rr * (rh * rt + ih * it) + ir * (rh * it - ih * rt)
    # Lane (hidden-dim) reduce -> (TILE_E, 1); tiny masked store, negligible traffic.
    out_ref[...] = jnp.sum(score, axis=-1, keepdims=True)


def _round_up(x, m):
    return ((x + m - 1) // m) * m


def _tpu_vmem_and_cores():
    """Best-effort query of per-core VMEM capacity and TensorCores per chip."""
    vmem_cap = 64 * 1024 * 1024   # conservative fallback (v7x per-TC size)
    num_cores = 1
    try:
        info = pltpu.get_tpu_info()
        vmem_cap = int(getattr(info, "vmem_capacity_bytes", vmem_cap))
        for attr in ("num_cores", "tensorcores_per_chip", "num_tensorcores"):
            v = getattr(info, attr, None)
            if v:
                num_cores = int(v)
                break
    except Exception:
        pass
    try:
        num_cores = max(num_cores, int(getattr(jax.devices()[0], "num_cores", 1)))
    except Exception:
        pass
    return vmem_cap, max(1, num_cores)


def _choose_tiling(E, D, itemsize, vmem_budget_bytes, num_cores):
    """Pick an edge-tile size whose 3 double-buffered input tiles fit the budget."""
    # Sublane alignment for the edge axis: f32 -> 8, bf16 -> 16, int8 -> 32.
    align = max(8, 32 // max(itemsize, 1))
    lanes = _round_up(max(D, 1), 128)          # VMEM lane padding of the hidden dim
    bytes_per_edge = 3 * 2 * lanes * itemsize  # 3 inputs x double buffer
    tile = (vmem_budget_bytes // max(bytes_per_edge, 1)) // align * align
    tile = max(align, min(tile, _round_up(E, align)))
    grid_len = pl.cdiv(E, tile)
    if num_cores > 1 and E > align * num_cores:
        # Multi-TC chips (v7x): balance the "parallel" grid axis across cores.
        grid_len = _round_up(grid_len, num_cores)
        tile = _round_up(pl.cdiv(E, grid_len), align)
        grid_len = pl.cdiv(E, tile)
    return tile, grid_len


def complex_edge_score(head_emb, rel_emb, tail_emb, *, tile_edges=None):
    """ComplEx edge score: returns (num_edges,) float32 scores."""
    E, D = head_emb.shape
    assert rel_emb.shape == (E, D) and tail_emb.shape == (E, D)
    assert D % 2 == 0
    itemsize = jnp.dtype(head_emb.dtype).itemsize

    vmem_cap, num_cores = _tpu_vmem_and_cores()
    # Keep the scoped limit within half the physical VMEM (32 MiB on v7x,
    # 64 MiB on v5e/v6e) and spend ~60% of it on the double-buffered inputs.
    vmem_limit_bytes = int(min(vmem_cap // 2, 64 * 1024 * 1024))
    vmem_budget = int(vmem_limit_bytes * 0.6)

    if tile_edges is None:
        tile_edges, grid_len = _choose_tiling(E, D, itemsize, vmem_budget, num_cores)
    else:
        grid_len = pl.cdiv(E, tile_edges)

    # Natural [E, D] layout: one contiguous HBM slab per block; last block may
    # overhang the array (ragged E) — safe, see header comment.
    in_spec = pl.BlockSpec((tile_edges, D), lambda i: (i, 0))
    out_spec = pl.BlockSpec((tile_edges, 1), lambda i: (i, 0))

    half = D // 2
    cost = pl.CostEstimate(
        flops=10 * E * half,
        transcendentals=0,
        bytes_accessed=3 * E * D * itemsize + E * 4,
    )

    out = pl.pallas_call(
        _complex_score_kernel,
        out_shape=jax.ShapeDtypeStruct((E, 1), jnp.float32),
        grid_spec=pltpu.PrefetchScalarGridSpec(
            num_scalar_prefetch=0,
            grid=(grid_len,),
            in_specs=[in_spec] * 3,
            out_specs=out_spec,
        ),
        compiler_params=pltpu.CompilerParams(
            dimension_semantics=("parallel",),
            vmem_limit_bytes=vmem_limit_bytes,
        ),
        cost_estimate=cost,
    )(head_emb, rel_emb, tail_emb)
    return out[:, 0]


def complex_edge_score_ref(head_emb, rel_emb, tail_emb):
    D = head_emb.shape[-1]
    h = D // 2
    rh, ih = head_emb[:, :h], head_emb[:, h:]
    rt, it = tail_emb[:, :h], tail_emb[:, h:]
    rr, ir = rel_emb[:, :h], rel_emb[:, h:]
    s = rh * rt * rr + ih * it * rr + rh * it * ir - ih * rt * ir
    return jnp.sum(s, axis=-1)


if __name__ == "__main__":
    num_edges = 200     # deliberately not a multiple of the tile (ragged path)
    hidden_dim = 32     # ComplEx embedding dim (real + imag halves)

    key = jax.random.PRNGKey(0)
    kh, kr, kt = jax.random.split(key, 3)
    head_emb = jax.random.normal(kh, (num_edges, hidden_dim), dtype=jnp.float32)
    rel_emb = jax.random.normal(kr, (num_edges, hidden_dim), dtype=jnp.float32)
    tail_emb = jax.random.normal(kt, (num_edges, hidden_dim), dtype=jnp.float32)

    # f32 path
    score = jax.block_until_ready(complex_edge_score(head_emb, rel_emb, tail_emb))
    ref = complex_edge_score_ref(head_emb, rel_emb, tail_emb)
    assert score.shape == (num_edges,)
    assert jnp.allclose(score, ref, atol=1e-4, rtol=1e-4)

    # bf16 inputs (halves HBM read bytes); kernel upcasts and accumulates in f32.
    head_bf = head_emb.astype(jnp.bfloat16)
    rel_bf = rel_emb.astype(jnp.bfloat16)
    tail_bf = tail_emb.astype(jnp.bfloat16)
    score_bf = jax.block_until_ready(complex_edge_score(head_bf, rel_bf, tail_bf))
    ref_bf = complex_edge_score_ref(head_bf.astype(jnp.float32),
                                    rel_bf.astype(jnp.float32),
                                    tail_bf.astype(jnp.float32))
    assert score_bf.shape == (num_edges,)
    assert jnp.allclose(score_bf, ref_bf, atol=1e-3, rtol=1e-3)

    print("KERNEL_OK")
</pallas_src>

<mosaic_0001>
module attributes {stable_mosaic.version = 11 : i64} {
  func.func @_complex_score_kernel(%arg0: i32, %arg1: memref<200x32xf32, #tpu.memory_space<vmem>>, %arg2: memref<200x32xf32, #tpu.memory_space<vmem>>, %arg3: memref<200x32xf32, #tpu.memory_space<vmem>>, %arg4: memref<200x1xf32, #tpu.memory_space<vmem>>) attributes {dimension_semantics = [#tpu.dimension_semantics<parallel>], iteration_bounds = array<i64: 1>, scalar_prefetch = 0 : i64, scratch_operands = 0 : i64, tpu.core_type = #tpu.core_type<tc>, window_params = [{transform_indices = @transform_0, window_bounds = array<i64: 200, 32>}, {transform_indices = @transform_1, window_bounds = array<i64: 200, 32>}, {transform_indices = @transform_2, window_bounds = array<i64: 200, 32>}, {transform_indices = @transform_3, window_bounds = array<i64: 200, 1>}]} {
    %c0 = arith.constant 0 : index
    %c0_0 = arith.constant 0 : index
    %0 = vector.load %arg1[%c0, %c0_0] : memref<200x32xf32, #tpu.memory_space<vmem>>, vector<200x32xf32>
    %c0_1 = arith.constant 0 : index
    %c0_2 = arith.constant 0 : index
    %1 = vector.load %arg2[%c0_1, %c0_2] : memref<200x32xf32, #tpu.memory_space<vmem>>, vector<200x32xf32>
    %c0_3 = arith.constant 0 : index
    %c0_4 = arith.constant 0 : index
    %2 = vector.load %arg3[%c0_3, %c0_4] : memref<200x32xf32, #tpu.memory_space<vmem>>, vector<200x32xf32>
    %3 = vector.extract_strided_slice %0 {offsets = [0, 0], sizes = [200, 16], strides = [1, 1]} : vector<200x32xf32> to vector<200x16xf32>
    %4 = vector.extract_strided_slice %0 {offsets = [0, 16], sizes = [200, 16], strides = [1, 1]} : vector<200x32xf32> to vector<200x16xf32>
    %5 = vector.extract_strided_slice %1 {offsets = [0, 0], sizes = [200, 16], strides = [1, 1]} : vector<200x32xf32> to vector<200x16xf32>
    %6 = vector.extract_strided_slice %1 {offsets = [0, 16], sizes = [200, 16], strides = [1, 1]} : vector<200x32xf32> to vector<200x16xf32>
    %7 = vector.extract_strided_slice %2 {offsets = [0, 0], sizes = [200, 16], strides = [1, 1]} : vector<200x32xf32> to vector<200x16xf32>
    %8 = vector.extract_strided_slice %2 {offsets = [0, 16], sizes = [200, 16], strides = [1, 1]} : vector<200x32xf32> to vector<200x16xf32>
    %9 = arith.mulf %3, %7 : vector<200x16xf32>
    %10 = arith.mulf %4, %8 : vector<200x16xf32>
    %11 = arith.addf %9, %10 : vector<200x16xf32>
    %12 = arith.mulf %5, %11 : vector<200x16xf32>
    %13 = arith.mulf %3, %8 : vector<200x16xf32>
    %14 = arith.mulf %4, %7 : vector<200x16xf32>
    %15 = arith.subf %13, %14 : vector<200x16xf32>
    %16 = arith.mulf %6, %15 : vector<200x16xf32>
    %17 = arith.addf %12, %16 : vector<200x16xf32>
    %cst = arith.constant dense<0.000000e+00> : vector<200xf32>
    %18 = vector.multi_reduction <add>, %17, %cst [1] : vector<200x16xf32> to vector<200xf32>
    %19 = vector.shape_cast %18 : vector<200xf32> to vector<200x1xf32>
    %c0_5 = arith.constant 0 : index
    %c0_6 = arith.constant 0 : index
    %20 = vector.load %arg4[%c0_5, %c0_6] : memref<200x1xf32, #tpu.memory_space<vmem>>, vector<200x1xf32>
    tpu.vector_store %arg4[%c0_5, %c0_6], %19 {strides = array<i32>} : memref<200x1xf32, #tpu.memory_space<vmem>>, vector<200x1xf32>,
    return
  }
  func.func @transform_0(%arg0: i32) -> (i32, i32) {
    %c0_i32 = arith.constant 0 : i32
    %c0_i32_0 = arith.constant 0 : i32
    return %arg0, %c0_i32 : i32, i32
  }
  func.func @transform_1(%arg0: i32) -> (i32, i32) {
    %c0_i32 = arith.constant 0 : i32
    %c0_i32_0 = arith.constant 0 : i32
    return %arg0, %c0_i32 : i32, i32
  }
  func.func @transform_2(%arg0: i32) -> (i32, i32) {
    %c0_i32 = arith.constant 0 : i32
    %c0_i32_0 = arith.constant 0 : i32
    return %arg0, %c0_i32 : i32, i32
  }
  func.func @transform_3(%arg0: i32) -> (i32, i32) {
    %c0_i32 = arith.constant 0 : i32
    %c0_i32_0 = arith.constant 0 : i32
    return %arg0, %c0_i32 : i32, i32
  }
}

</mosaic_0001>

<llo_original>
// kernel: tpu_custom_call.1
$region0: #{tpu_custom_call.1}
  #allocation0 [shape = 'u32[]', space=smem, size = 0x4, offset = 0x4, fixed_abs, tag = 'smem constant byte address 0x4 - core index']
  #allocation1 [shape = 'u32[72,128]{1,0:T(1,128)}', space=vmem, size = 0x9000, scoped, tag = 'internal scratch']
  %s0 = inlined_call_operand.vmem [shape: f32[200,32], index: 0, kind: input, shape index: {}]
  %s1 = inlined_call_operand.vmem [shape: f32[200,32], index: 1, kind: input, shape index: {}]
  %s2 = inlined_call_operand.vmem [shape: f32[200,32], index: 2, kind: input, shape index: {}]
  %s3 = inlined_call_operand.vmem [shape: f32[200,1], index: 3, kind: output, shape index: {}]
  %s4 = sld [smem:[#allocation0]]
  $region22: #{tpu_custom_call.1} parent=0
    _
  %s6 = ssub.s32 1, %s4
  %s7 = scalar_select 0, %s6, %s4
  // Predicated region
  $region2: #{tpu_custom_call.1} parent=0 // pred_check
    _
  $region3: #{tpu_custom_call.1} parent=0 // pred_check_branch
    %9 = sbr.rel (0) target = $region5
  $region4: #{tpu_custom_call.1} parent=0 // pred_region
    _
  $region5: #{tpu_custom_call.1} parent=0 // pred_fallthru
    _
  // Predicated region
  $region6: #{tpu_custom_call.1} parent=0 // pred_check
    _
  $region7: #{tpu_custom_call.1} parent=0 // pred_check_branch
    %11 = sbr.rel (0) target = $region9
  $region8: #{tpu_custom_call.1} parent=0 // pred_region
    _
  $region9: #{tpu_custom_call.1} parent=0 // pred_fallthru
    _
  // Predicated region
  $region10: #{tpu_custom_call.1} parent=0 // pred_check
    _
  $region11: #{tpu_custom_call.1} parent=0 // pred_check_branch
    %13 = sbr.rel (0) target = $region13
  $region12: #{tpu_custom_call.1} parent=0 // pred_region
    _
  $region13: #{tpu_custom_call.1} parent=0 // pred_fallthru
    _
  %v14 = vld [vmem:[%s0] sm:$0xff]
  %v15 = vld [vmem:[%s0 + $0x8] sm:$0xff]
  %v16 = vld [vmem:[%s0 + $0x10] sm:$0xff]
  %v17 = vld [vmem:[%s0 + $0x18] sm:$0xff]
  %v18 = vld [vmem:[%s0 + $0x20] sm:$0xff]
  %v19 = vld [vmem:[%s0 + $0x28] sm:$0xff]
  %v20 = vld [vmem:[%s0 + $0x30] sm:$0xff]
  %v21 = vld [vmem:[%s0 + $0x38] sm:$0xff]
  %v22 = vld [vmem:[%s0 + $0x40] sm:$0xff]
  %v23 = vld [vmem:[%s0 + $0x48] sm:$0xff]
  %v24 = vld [vmem:[%s0 + $0x50] sm:$0xff]
  %v25 = vld [vmem:[%s0 + $0x58] sm:$0xff]
  %v26 = vld [vmem:[%s0 + $0x60] sm:$0xff]
  %v27 = vld [vmem:[%s0 + $0x68] sm:$0xff]
  %v28 = vld [vmem:[%s0 + $0x70] sm:$0xff]
  %v29 = vld [vmem:[%s0 + $0x78] sm:$0xff]
  %v30 = vld [vmem:[%s0 + $0x80] sm:$0xff]
  %v31 = vld [vmem:[%s0 + $0x88] sm:$0xff]
  %v32 = vld [vmem:[%s0 + $0x90] sm:$0xff]
  %v33 = vld [vmem:[%s0 + $0x98] sm:$0xff]
  %v34 = vld [vmem:[%s0 + $0xa0] sm:$0xff]
  %v35 = vld [vmem:[%s0 + $0xa8] sm:$0xff]
  %v36 = vld [vmem:[%s0 + $0xb0] sm:$0xff]
  %v37 = vld [vmem:[%s0 + $0xb8] sm:$0xff]
  %v38 = vld [vmem:[%s0 + $0xc0] sm:$0xff]
  %v39 = vld [vmem:[%s1] sm:$0xff]
  %v40 = vld [vmem:[%s1 + $0x8] sm:$0xff]
  %v41 = vld [vmem:[%s1 + $0x10] sm:$0xff]
  %v42 = vld [vmem:[%s1 + $0x18] sm:$0xff]
  %v43 = vld [vmem:[%s1 + $0x20] sm:$0xff]
  %v44 = vld [vmem:[%s1 + $0x28] sm:$0xff]
  %v45 = vld [vmem:[%s1 + $0x30] sm:$0xff]
  %v46 = vld [vmem:[%s1 + $0x38] sm:$0xff]
  %v47 = vld [vmem:[%s1 + $0x40] sm:$0xff]
  %v48 = vld [vmem:[%s1 + $0x48] sm:$0xff]
  %v49 = vld [vmem:[%s1 + $0x50] sm:$0xff]
  %v50 = vld [vmem:[%s1 + $0x58] sm:$0xff]
  %v51 = vld [vmem:[%s1 + $0x60] sm:$0xff]
  %v52 = vld [vmem:[%s1 + $0x68] sm:$0xff]
  %v53 = vld [vmem:[%s1 + $0x70] sm:$0xff]
  %v54 = vld [vmem:[%s1 + $0x78] sm:$0xff]
  %v55 = vld [vmem:[%s1 + $0x80] sm:$0xff]
  %v56 = vld [vmem:[%s1 + $0x88] sm:$0xff]
  %v57 = vld [vmem:[%s1 + $0x90] sm:$0xff]
  %v58 = vld [vmem:[%s1 + $0x98] sm:$0xff]
  %v59 = vld [vmem:[%s1 + $0xa0] sm:$0xff]
  %v60 = vld [vmem:[%s1 + $0xa8] sm:$0xff]
  %v61 = vld [vmem:[%s1 + $0xb0] sm:$0xff]
  %v62 = vld [vmem:[%s1 + $0xb8] sm:$0xff]
  %v63 = vld [vmem:[%s1 + $0xc0] sm:$0xff]
  %v64 = vld [vmem:[%s2] sm:$0xff]
  %v65 = vld [vmem:[%s2 + $0x8] sm:$0xff]
  %v66 = vld [vmem:[%s2 + $0x10] sm:$0xff]
  %v67 = vld [vmem:[%s2 + $0x18] sm:$0xff]
  %v68 = vld [vmem:[%s2 + $0x20] sm:$0xff]
  %v69 = vld [vmem:[%s2 + $0x28] sm:$0xff]
  %v70 = vld [vmem:[%s2 + $0x30] sm:$0xff]
  %v71 = vld [vmem:[%s2 + $0x38] sm:$0xff]
  %v72 = vld [vmem:[%s2 + $0x40] sm:$0xff]
  %v73 = vld [vmem:[%s2 + $0x48] sm:$0xff]
  %v74 = vld [vmem:[%s2 + $0x50] sm:$0xff]
  %v75 = vld [vmem:[%s2 + $0x58] sm:$0xff]
  %v76 = vld [vmem:[%s2 + $0x60] sm:$0xff]
  %v77 = vld [vmem:[%s2 + $0x68] sm:$0xff]
  %v78 = vld [vmem:[%s2 + $0x70] sm:$0xff]
  %v79 = vld [vmem:[%s2 + $0x78] sm:$0xff]
  %v80 = vld [vmem:[%s2 + $0x80] sm:$0xff]
  %v81 = vld [vmem:[%s2 + $0x88] sm:$0xff]
  %v82 = vld [vmem:[%s2 + $0x90] sm:$0xff]
  %v83 = vld [vmem:[%s2 + $0x98] sm:$0xff]
  %v84 = vld [vmem:[%s2 + $0xa0] sm:$0xff]
  %v85 = vld [vmem:[%s2 + $0xa8] sm:$0xff]
  %v86 = vld [vmem:[%s2 + $0xb0] sm:$0xff]
  %v87 = vld [vmem:[%s2 + $0xb8] sm:$0xff]
  %v88 = vld [vmem:[%s2 + $0xc0] sm:$0xff]
  %v89 = vmul.f32 %v14, %v64
  %v90 = vmul.f32 %v15, %v65
  %v91 = vmul.f32 %v16, %v66
  %v92 = vmul.f32 %v17, %v67
  %v93 = vmul.f32 %v18, %v68
  %v94 = vmul.f32 %v19, %v69
  %v95 = vmul.f32 %v20, %v70
  %v96 = vmul.f32 %v21, %v71
  %v97 = vmul.f32 %v22, %v72
  %v98 = vmul.f32 %v23, %v73
  %v99 = vmul.f32 %v24, %v74
  %v100 = vmul.f32 %v25, %v75
  %v101 = vmul.f32 %v26, %v76
  %v102 = vmul.f32 %v27, %v77
  %v103 = vmul.f32 %v28, %v78
  %v104 = vmul.f32 %v29, %v79
  %v105 = vmul.f32 %v30, %v80
  %v106 = vmul.f32 %v31, %v81
  %v107 = vmul.f32 %v32, %v82
  %v108 = vmul.f32 %v33, %v83
  %v109 = vmul.f32 %v34, %v84
  %v110 = vmul.f32 %v35, %v85
  %v111 = vmul.f32 %v36, %v86
  %v112 = vmul.f32 %v37, %v87
  %v113 = vmul.f32 %v38, %v88
  %139 = vrot.lane.b32.xlu0 %v89, 112
  %v140 = vpop.permute.xlu0 %139
  %141 = vrot.lane.b32.xlu0 %v90, 112
  %v142 = vpop.permute.xlu0 %141
  %143 = vrot.lane.b32.xlu0 %v91, 112
  %v144 = vpop.permute.xlu0 %143
  %145 = vrot.lane.b32.xlu0 %v92, 112
  %v146 = vpop.permute.xlu0 %145
  %147 = vrot.lane.b32.xlu0 %v93, 112
  %v148 = vpop.permute.xlu0 %147
  %149 = vrot.lane.b32.xlu0 %v94, 112
  %v150 = vpop.permute.xlu0 %149
  %151 = vrot.lane.b32.xlu0 %v95, 112
  %v152 = vpop.permute.xlu0 %151
  %153 = vrot.lane.b32.xlu0 %v96, 112
  %v154 = vpop.permute.xlu0 %153
  %155 = vrot.lane.b32.xlu0 %v97, 112
  %v156 = vpop.permute.xlu0 %155
  %157 = vrot.lane.b32.xlu0 %v98, 112
  %v158 = vpop.permute.xlu0 %157
  %159 = vrot.lane.b32.xlu0 %v99, 112
  %v160 = vpop.permute.xlu0 %159
  %161 = vrot.lane.b32.xlu0 %v100, 112
  %v162 = vpop.permute.xlu0 %161
  %163 = vrot.lane.b32.xlu0 %v101, 112
  %v164 = vpop.permute.xlu0 %163
  %165 = vrot.lane.b32.xlu0 %v102, 112
  %v166 = vpop.permute.xlu0 %165
  %167 = vrot.lane.b32.xlu0 %v103, 112
  %v168 = vpop.permute.xlu0 %167
  %169 = vrot.lane.b32.xlu0 %v104, 112
  %v170 = vpop.permute.xlu0 %169
  %171 = vrot.lane.b32.xlu0 %v105, 112
  %v172 = vpop.permute.xlu0 %171
  %173 = vrot.lane.b32.xlu0 %v106, 112
  %v174 = vpop.permute.xlu0 %173
  %175 = vrot.lane.b32.xlu0 %v107, 112
  %v176 = vpop.permute.xlu0 %175
  %177 = vrot.lane.b32.xlu0 %v108, 112
  %v178 = vpop.permute.xlu0 %177
  %179 = vrot.lane.b32.xlu0 %v109, 112
  %v180 = vpop.permute.xlu0 %179
  %181 = vrot.lane.b32.xlu0 %v110, 112
  %v182 = vpop.permute.xlu0 %181
  %183 = vrot.lane.b32.xlu0 %v111, 112
  %v184 = vpop.permute.xlu0 %183
  %185 = vrot.lane.b32.xlu0 %v112, 112
  %v186 = vpop.permute.xlu0 %185
  %187 = vrot.lane.b32.xlu0 %v113, 112
  %v188 = vpop.permute.xlu0 %187
  %v214 = vadd.f32 %v89, %v140
  %v215 = vadd.f32 %v90, %v142
  %v216 = vadd.f32 %v91, %v144
  %v217 = vadd.f32 %v92, %v146
  %v218 = vadd.f32 %v93, %v148
  %v219 = vadd.f32 %v94, %v150
  %v220 = vadd.f32 %v95, %v152
  %v221 = vadd.f32 %v96, %v154
  %v222 = vadd.f32 %v97, %v156
  %v223 = vadd.f32 %v98, %v158
  %v224 = vadd.f32 %v99, %v160
  %v225 = vadd.f32 %v100, %v162
  %v226 = vadd.f32 %v101, %v164
  %v227 = vadd.f32 %v102, %v166
  %v228 = vadd.f32 %v103, %v168
  %v229 = vadd.f32 %v104, %v170
  %v230 = vadd.f32 %v105, %v172
  %v231 = vadd.f32 %v106, %v174
  %v232 = vadd.f32 %v107, %v176
  %v233 = vadd.f32 %v108, %v178
  %v234 = vadd.f32 %v109, %v180
  %v235 = vadd.f32 %v110, %v182
  %v236 = vadd.f32 %v111, %v184
  %v237 = vadd.f32 %v112, %v186
  %v238 = vadd.f32 %v113, %v188
  %v239 = vmul.f32 %v39, %v214
  %v240 = vmul.f32 %v40, %v215
  %v241 = vmul.f32 %v41, %v216
  %v242 = vmul.f32 %v42, %v217
  %v243 = vmul.f32 %v43, %v218
  %v244 = vmul.f32 %v44, %v219
  %v245 = vmul.f32 %v45, %v220
  %v246 = vmul.f32 %v46, %v221
  %v247 = vmul.f32 %v47, %v222
  %v248 = vmul.f32 %v48, %v223
  %v249 = vmul.f32 %v49, %v224
  %v250 = vmul.f32 %v50, %v225
  %v251 = vmul.f32 %v51, %v226
  %v252 = vmul.f32 %v52, %v227
  %v253 = vmul.f32 %v53, %v228
  %v254 = vmul.f32 %v54, %v229
  %v255 = vmul.f32 %v55, %v230
  %v256 = vmul.f32 %v56, %v231
  %v257 = vmul.f32 %v57, %v232
  %v258 = vmul.f32 %v58, %v233
  %v259 = vmul.f32 %v59, %v234
  %v260 = vmul.f32 %v60, %v235
  %v261 = vmul.f32 %v61, %v236
  %v262 = vmul.f32 %v62, %v237
  %v263 = vmul.f32 %v63, %v238
  %289 = vrot.lane.b32.xlu0 %v64, 112
  %v290 = vpop.permute.xlu0 %289
  %291 = vrot.lane.b32.xlu0 %v65, 112
  %v292 = vpop.permute.xlu0 %291
  %293 = vrot.lane.b32.xlu0 %v66, 112
  %v294 = vpop.permute.xlu0 %293
  %295 = vrot.lane.b32.xlu0 %v67, 112
  %v296 = vpop.permute.xlu0 %295
  %297 = vrot.lane.b32.xlu0 %v68, 112
  %v298 = vpop.permute.xlu0 %297
  %299 = vrot.lane.b32.xlu0 %v69, 112
  %v300 = vpop.permute.xlu0 %299
  %301 = vrot.lane.b32.xlu0 %v70, 112
  %v302 = vpop.permute.xlu0 %301
  %303 = vrot.lane.b32.xlu0 %v71, 112
  %v304 = vpop.permute.xlu0 %303
  %305 = vrot.lane.b32.xlu0 %v72, 112
  %v306 = vpop.permute.xlu0 %305
  %307 = vrot.lane.b32.xlu0 %v73, 112
  %v308 = vpop.permute.xlu0 %307
  %309 = vrot.lane.b32.xlu0 %v74, 112
  %v310 = vpop.permute.xlu0 %309
  %311 = vrot.lane.b32.xlu0 %v75, 112
  %v312 = vpop.permute.xlu0 %311
  %313 = vrot.lane.b32.xlu0 %v76, 112
  %v314 = vpop.permute.xlu0 %313
  %315 = vrot.lane.b32.xlu0 %v77, 112
  %v316 = vpop.permute.xlu0 %315
  %317 = vrot.lane.b32.xlu0 %v78, 112
  %v318 = vpop.permute.xlu0 %317
  %319 = vrot.lane.b32.xlu0 %v79, 112
  %v320 = vpop.permute.xlu0 %319
  %321 = vrot.lane.b32.xlu0 %v80, 112
  %v322 = vpop.permute.xlu0 %321
  %323 = vrot.lane.b32.xlu0 %v81, 112
  %v324 = vpop.permute.xlu0 %323
  %325 = vrot.lane.b32.xlu0 %v82, 112
  %v326 = vpop.permute.xlu0 %325
  %327 = vrot.lane.b32.xlu0 %v83, 112
  %v328 = vpop.permute.xlu0 %327
  %329 = vrot.lane.b32.xlu0 %v84, 112
  %v330 = vpop.permute.xlu0 %329
  %331 = vrot.lane.b32.xlu0 %v85, 112
  %v332 = vpop.permute.xlu0 %331
  %333 = vrot.lane.b32.xlu0 %v86, 112
  %v334 = vpop.permute.xlu0 %333
  %335 = vrot.lane.b32.xlu0 %v87, 112
  %v336 = vpop.permute.xlu0 %335
  %337 = vrot.lane.b32.xlu0 %v88, 112
  %v338 = vpop.permute.xlu0 %337
  %v364 = vmul.f32 %v14, %v290
  %v365 = vmul.f32 %v15, %v292
  %v366 = vmul.f32 %v16, %v294
  %v367 = vmul.f32 %v17, %v296
  %v368 = vmul.f32 %v18, %v298
  %v369 = vmul.f32 %v19, %v300
  %v370 = vmul.f32 %v20, %v302
  %v371 = vmul.f32 %v21, %v304
  %v372 = vmul.f32 %v22, %v306
  %v373 = vmul.f32 %v23, %v308
  %v374 = vmul.f32 %v24, %v310
  %v375 = vmul.f32 %v25, %v312
  %v376 = vmul.f32 %v26, %v314
  %v377 = vmul.f32 %v27, %v316
  %v378 = vmul.f32 %v28, %v318
  %v379 = vmul.f32 %v29, %v320
  %v380 = vmul.f32 %v30, %v322
  %v381 = vmul.f32 %v31, %v324
  %v382 = vmul.f32 %v32, %v326
  %v383 = vmul.f32 %v33, %v328
  %v384 = vmul.f32 %v34, %v330
  %v385 = vmul.f32 %v35, %v332
  %v386 = vmul.f32 %v36, %v334
  %v387 = vmul.f32 %v37, %v336
  %v388 = vmul.f32 %v38, %v338
  %389 = vrot.lane.b32.xlu0 %v64, 16
  %v390 = vpop.permute.xlu0 %389
  %391 = vrot.lane.b32.xlu0 %v65, 16
  %v392 = vpop.permute.xlu0 %391
  %393 = vrot.lane.b32.xlu0 %v66, 16
  %v394 = vpop.permute.xlu0 %393
  %395 = vrot.lane.b32.xlu0 %v67, 16
  %v396 = vpop.permute.xlu0 %395
  %397 = vrot.lane.b32.xlu0 %v68, 16
  %v398 = vpop.permute.xlu0 %397
  %399 = vrot.lane.b32.xlu0 %v69, 16
  %v400 = vpop.permute.xlu0 %399
  %401 = vrot.lane.b32.xlu0 %v70, 16
  %v402 = vpop.permute.xlu0 %401
  %403 = vrot.lane.b32.xlu0 %v71, 16
  %v404 = vpop.permute.xlu0 %403
  %405 = vrot.lane.b32.xlu0 %v72, 16
  %v406 = vpop.permute.xlu0 %405
  %407 = vrot.lane.b32.xlu0 %v73, 16
  %v408 = vpop.permute.xlu0 %407
  %409 = vrot.lane.b32.xlu0 %v74, 16
  %v410 = vpop.permute.xlu0 %409
  %411 = vrot.lane.b32.xlu0 %v75, 16
  %v412 = vpop.permute.xlu0 %411
  %413 = vrot.lane.b32.xlu0 %v76, 16
  %v414 = vpop.permute.xlu0 %413
  %415 = vrot.lane.b32.xlu0 %v77, 16
  %v416 = vpop.permute.xlu0 %415
  %417 = vrot.lane.b32.xlu0 %v78, 16
  %v418 = vpop.permute.xlu0 %417
  %419 = vrot.lane.b32.xlu0 %v79, 16
  %v420 = vpop.permute.xlu0 %419
  %421 = vrot.lane.b32.xlu0 %v80, 16
  %v422 = vpop.permute.xlu0 %421
  %423 = vrot.lane.b32.xlu0 %v81, 16
  %v424 = vpop.permute.xlu0 %423
  %425 = vrot.lane.b32.xlu0 %v82, 16
  %v426 = vpop.permute.xlu0 %425
  %427 = vrot.lane.b32.xlu0 %v83, 16
  %v428 = vpop.permute.xlu0 %427
  %429 = vrot.lane.b32.xlu0 %v84, 16
  %v430 = vpop.permute.xlu0 %429
  %431 = vrot.lane.b32.xlu0 %v85, 16
  %v432 = vpop.permute.xlu0 %431
  %433 = vrot.lane.b32.xlu0 %v86, 16
  %v434 = vpop.permute.xlu0 %433
  %435 = vrot.lane.b32.xlu0 %v87, 16
  %v436 = vpop.permute.xlu0 %435
  %437 = vrot.lane.b32.xlu0 %v88, 16
  %v438 = vpop.permute.xlu0 %437
  %v464 = vmul.f32 %v14, %v390
  %v465 = vmul.f32 %v15, %v392
  %v466 = vmul.f32 %v16, %v394
  %v467 = vmul.f32 %v17, %v396
  %v468 = vmul.f32 %v18, %v398
  %v469 = vmul.f32 %v19, %v400
  %v470 = vmul.f32 %v20, %v402
  %v471 = vmul.f32 %v21, %v404
  %v472 = vmul.f32 %v22, %v406
  %v473 = vmul.f32 %v23, %v408
  %v474 = vmul.f32 %v24, %v410
  %v475 = vmul.f32 %v25, %v412
  %v476 = vmul.f32 %v26, %v414
  %v477 = vmul.f32 %v27, %v416
  %v478 = vmul.f32 %v28, %v418
  %v479 = vmul.f32 %v29, %v420
  %v480 = vmul.f32 %v30, %v422
  %v481 = vmul.f32 %v31, %v424
  %v482 = vmul.f32 %v32, %v426
  %v483 = vmul.f32 %v33, %v428
  %v484 = vmul.f32 %v34, %v430
  %v485 = vmul.f32 %v35, %v432
  %v486 = vmul.f32 %v36, %v434
  %v487 = vmul.f32 %v37, %v436
  %v488 = vmul.f32 %v38, %v438
  %514 = vrot.lane.b32.xlu0 %v464, 112
  %v515 = vpop.permute.xlu0 %514
  %516 = vrot.lane.b32.xlu0 %v465, 112
  %v517 = vpop.permute.xlu0 %516
  %518 = vrot.lane.b32.xlu0 %v466, 112
  %v519 = vpop.permute.xlu0 %518
  %520 = vrot.lane.b32.xlu0 %v467, 112
  %v521 = vpop.permute.xlu0 %520
  %522 = vrot.lane.b32.xlu0 %v468, 112
  %v523 = vpop.permute.xlu0 %522
  %524 = vrot.lane.b32.xlu0 %v469, 112
  %v525 = vpop.permute.xlu0 %524
  %526 = vrot.lane.b32.xlu0 %v470, 112
  %v527 = vpop.permute.xlu0 %526
  %528 = vrot.lane.b32.xlu0 %v471, 112
  %v529 = vpop.permute.xlu0 %528
  %530 = vrot.lane.b32.xlu0 %v472, 112
  %v531 = vpop.permute.xlu0 %530
  %532 = vrot.lane.b32.xlu0 %v473, 112
  %v533 = vpop.permute.xlu0 %532
  %534 = vrot.lane.b32.xlu0 %v474, 112
  %v535 = vpop.permute.xlu0 %534
  %536 = vrot.lane.b32.xlu0 %v475, 112
  %v537 = vpop.permute.xlu0 %536
  %538 = vrot.lane.b32.xlu0 %v476, 112
  %v539 = vpop.permute.xlu0 %538
  %540 = vrot.lane.b32.xlu0 %v477, 112
  %v541 = vpop.permute.xlu0 %540
  %542 = vrot.lane.b32.xlu0 %v478, 112
  %v543 = vpop.permute.xlu0 %542
  %544 = vrot.lane.b32.xlu0 %v479, 112
  %v545 = vpop.permute.xlu0 %544
  %546 = vrot.lane.b32.xlu0 %v480, 112
  %v547 = vpop.permute.xlu0 %546
  %548 = vrot.lane.b32.xlu0 %v481, 112
  %v549 = vpop.permute.xlu0 %548
  %550 = vrot.lane.b32.xlu0 %v482, 112
  %v551 = vpop.permute.xlu0 %550
  %552 = vrot.lane.b32.xlu0 %v483, 112
  %v553 = vpop.permute.xlu0 %552
  %554 = vrot.lane.b32.xlu0 %v484, 112
  %v555 = vpop.permute.xlu0 %554
  %556 = vrot.lane.b32.xlu0 %v485, 112
  %v557 = vpop.permute.xlu0 %556
  %558 = vrot.lane.b32.xlu0 %v486, 112
  %v559 = vpop.permute.xlu0 %558
  %560 = vrot.lane.b32.xlu0 %v487, 112
  %v561 = vpop.permute.xlu0 %560
  %562 = vrot.lane.b32.xlu0 %v488, 112
  %v563 = vpop.permute.xlu0 %562
  %v589 = vsub.f32 %v364, %v515
  %v590 = vsub.f32 %v365, %v517
  %v591 = vsub.f32 %v366, %v519
  %v592 = vsub.f32 %v367, %v521
  %v593 = vsub.f32 %v368, %v523
  %v594 = vsub.f32 %v369, %v525
  %v595 = vsub.f32 %v370, %v527
  %v596 = vsub.f32 %v371, %v529
  %v597 = vsub.f32 %v372, %v531
  %v598 = vsub.f32 %v373, %v533
  %v599 = vsub.f32 %v374, %v535
  %v600 = vsub.f32 %v375, %v537
  %v601 = vsub.f32 %v376, %v539
  %v602 = vsub.f32 %v377, %v541
  %v603 = vsub.f32 %v378, %v543
  %v604 = vsub.f32 %v379, %v545
  %v605 = vsub.f32 %v380, %v547
  %v606 = vsub.f32 %v381, %v549
  %v607 = vsub.f32 %v382, %v551
  %v608 = vsub.f32 %v383, %v553
  %v609 = vsub.f32 %v384, %v555
  %v610 = vsub.f32 %v385, %v557
  %v611 = vsub.f32 %v386, %v559
  %v612 = vsub.f32 %v387, %v561
  %v613 = vsub.f32 %v388, %v563
  %639 = vrot.lane.b32.xlu0 %v589, 16
  %v640 = vpop.permute.xlu0 %639
  %641 = vrot.lane.b32.xlu0 %v590, 16
  %v642 = vpop.permute.xlu0 %641
  %643 = vrot.lane.b32.xlu0 %v591, 16
  %v644 = vpop.permute.xlu0 %643
  %645 = vrot.lane.b32.xlu0 %v592, 16
  %v646 = vpop.permute.xlu0 %645
  %647 = vrot.lane.b32.xlu0 %v593, 16
  %v648 = vpop.permute.xlu0 %647
  %649 = vrot.lane.b32.xlu0 %v594, 16
  %v650 = vpop.permute.xlu0 %649
  %651 = vrot.lane.b32.xlu0 %v595, 16
  %v652 = vpop.permute.xlu0 %651
  %653 = vrot.lane.b32.xlu0 %v596, 16
  %v654 = vpop.permute.xlu0 %653
  %655 = vrot.lane.b32.xlu0 %v597, 16
  %v656 = vpop.permute.xlu0 %655
  %657 = vrot.lane.b32.xlu0 %v598, 16
  %v658 = vpop.permute.xlu0 %657
  %659 = vrot.lane.b32.xlu0 %v599, 16
  %v660 = vpop.permute.xlu0 %659
  %661 = vrot.lane.b32.xlu0 %v600, 16
  %v662 = vpop.permute.xlu0 %661
  %663 = vrot.lane.b32.xlu0 %v601, 16
  %v664 = vpop.permute.xlu0 %663
  %665 = vrot.lane.b32.xlu0 %v602, 16
  %v666 = vpop.permute.xlu0 %665
  %667 = vrot.lane.b32.xlu0 %v603, 16
  %v668 = vpop.permute.xlu0 %667
  %669 = vrot.lane.b32.xlu0 %v604, 16
  %v670 = vpop.permute.xlu0 %669
  %671 = vrot.lane.b32.xlu0 %v605, 16
  %v672 = vpop.permute.xlu0 %671
  %673 = vrot.lane.b32.xlu0 %v606, 16
  %v674 = vpop.permute.xlu0 %673
  %675 = vrot.lane.b32.xlu0 %v607, 16
  %v676 = vpop.permute.xlu0 %675
  %677 = vrot.lane.b32.xlu0 %v608, 16
  %v678 = vpop.permute.xlu0 %677
  %679 = vrot.lane.b32.xlu0 %v609, 16
  %v680 = vpop.permute.xlu0 %679
  %681 = vrot.lane.b32.xlu0 %v610, 16
  %v682 = vpop.permute.xlu0 %681
  %683 = vrot.lane.b32.xlu0 %v611, 16
  %v684 = vpop.permute.xlu0 %683
  %685 = vrot.lane.b32.xlu0 %v612, 16
  %v686 = vpop.permute.xlu0 %685
  %687 = vrot.lane.b32.xlu0 %v613, 16
  %v688 = vpop.permute.xlu0 %687
  %v714 = vmul.f32 %v39, %v640
  %v715 = vmul.f32 %v40, %v642
  %v716 = vmul.f32 %v41, %v644
  %v717 = vmul.f32 %v42, %v646
  %v718 = vmul.f32 %v43, %v648
  %v719 = vmul.f32 %v44, %v650
  %v720 = vmul.f32 %v45, %v652
  %v721 = vmul.f32 %v46, %v654
  %v722 = vmul.f32 %v47, %v656
  %v723 = vmul.f32 %v48, %v658
  %v724 = vmul.f32 %v49, %v660
  %v725 = vmul.f32 %v50, %v662
  %v726 = vmul.f32 %v51, %v664
  %v727 = vmul.f32 %v52, %v666
  %v728 = vmul.f32 %v53, %v668
  %v729 = vmul.f32 %v54, %v670
  %v730 = vmul.f32 %v55, %v672
  %v731 = vmul.f32 %v56, %v674
  %v732 = vmul.f32 %v57, %v676
  %v733 = vmul.f32 %v58, %v678
  %v734 = vmul.f32 %v59, %v680
  %v735 = vmul.f32 %v60, %v682
  %v736 = vmul.f32 %v61, %v684
  %v737 = vmul.f32 %v62, %v686
  %v738 = vmul.f32 %v63, %v688
  %764 = vrot.lane.b32.xlu0 %v714, 112
  %v765 = vpop.permute.xlu0 %764
  %766 = vrot.lane.b32.xlu0 %v715, 112
  %v767 = vpop.permute.xlu0 %766
  %768 = vrot.lane.b32.xlu0 %v716, 112
  %v769 = vpop.permute.xlu0 %768
  %770 = vrot.lane.b32.xlu0 %v717, 112
  %v771 = vpop.permute.xlu0 %770
  %772 = vrot.lane.b32.xlu0 %v718, 112
  %v773 = vpop.permute.xlu0 %772
  %774 = vrot.lane.b32.xlu0 %v719, 112
  %v775 = vpop.permute.xlu0 %774
  %776 = vrot.lane.b32.xlu0 %v720, 112
  %v777 = vpop.permute.xlu0 %776
  %778 = vrot.lane.b32.xlu0 %v721, 112
  %v779 = vpop.permute.xlu0 %778
  %780 = vrot.lane.b32.xlu0 %v722, 112
  %v781 = vpop.permute.xlu0 %780
  %782 = vrot.lane.b32.xlu0 %v723, 112
  %v783 = vpop.permute.xlu0 %782
  %784 = vrot.lane.b32.xlu0 %v724, 112
  %v785 = vpop.permute.xlu0 %784
  %786 = vrot.lane.b32.xlu0 %v725, 112
  %v787 = vpop.permute.xlu0 %786
  %788 = vrot.lane.b32.xlu0 %v726, 112
  %v789 = vpop.permute.xlu0 %788
  %790 = vrot.lane.b32.xlu0 %v727, 112
  %v791 = vpop.permute.xlu0 %790
  %792 = vrot.lane.b32.xlu0 %v728, 112
  %v793 = vpop.permute.xlu0 %792
  %794 = vrot.lane.b32.xlu0 %v729, 112
  %v795 = vpop.permute.xlu0 %794
  %796 = vrot.lane.b32.xlu0 %v730, 112
  %v797 = vpop.permute.xlu0 %796
  %798 = vrot.lane.b32.xlu0 %v731, 112
  %v799 = vpop.permute.xlu0 %798
  %800 = vrot.lane.b32.xlu0 %v732, 112
  %v801 = vpop.permute.xlu0 %800
  %802 = vrot.lane.b32.xlu0 %v733, 112
  %v803 = vpop.permute.xlu0 %802
  %804 = vrot.lane.b32.xlu0 %v734, 112
  %v805 = vpop.permute.xlu0 %804
  %806 = vrot.lane.b32.xlu0 %v735, 112
  %v807 = vpop.permute.xlu0 %806
  %808 = vrot.lane.b32.xlu0 %v736, 112
  %v809 = vpop.permute.xlu0 %808
  %810 = vrot.lane.b32.xlu0 %v737, 112
  %v811 = vpop.permute.xlu0 %810
  %812 = vrot.lane.b32.xlu0 %v738, 112
  %v813 = vpop.permute.xlu0 %812
  %v839 = vadd.f32 %v239, %v765
  %v840 = vadd.f32 %v240, %v767
  %v841 = vadd.f32 %v241, %v769
  %v842 = vadd.f32 %v242, %v771
  %v843 = vadd.f32 %v243, %v773
  %v844 = vadd.f32 %v244, %v775
  %v845 = vadd.f32 %v245, %v777
  %v846 = vadd.f32 %v246, %v779
  %v847 = vadd.f32 %v247, %v781
  %v848 = vadd.f32 %v248, %v783
  %v849 = vadd.f32 %v249, %v785
  %v850 = vadd.f32 %v250, %v787
  %v851 = vadd.f32 %v251, %v789
  %v852 = vadd.f32 %v252, %v791
  %v853 = vadd.f32 %v253, %v793
  %v854 = vadd.f32 %v254, %v795
  %v855 = vadd.f32 %v255, %v797
  %v856 = vadd.f32 %v256, %v799
  %v857 = vadd.f32 %v257, %v801
  %v858 = vadd.f32 %v258, %v803
  %v859 = vadd.f32 %v259, %v805
  %v860 = vadd.f32 %v260, %v807
  %v861 = vadd.f32 %v261, %v809
  %v862 = vadd.f32 %v262, %v811
  %v863 = vadd.f32 %v263, %v813
  %vm864 = vcmask 130048
  %v865 = vsel %vm864, %v839, 0.0
  %866 = vadd.xlane.f32.xlu0 %v865
  %v867 = vpop.xlane.xlu0 %866
  %v868 = vsel %vm864, %v840, 0.0
  %869 = vadd.xlane.f32.xlu0 %v868
  %v870 = vpop.xlane.xlu0 %869
  %v871 = vsel %vm864, %v841, 0.0
  %872 = vadd.xlane.f32.xlu0 %v871
  %v873 = vpop.xlane.xlu0 %872
  %v874 = vsel %vm864, %v842, 0.0
  %875 = vadd.xlane.f32.xlu0 %v874
  %v876 = vpop.xlane.xlu0 %875
  %v877 = vsel %vm864, %v843, 0.0
  %878 = vadd.xlane.f32.xlu0 %v877
  %v879 = vpop.xlane.xlu0 %878
  %v880 = vsel %vm864, %v844, 0.0
  %881 = vadd.xlane.f32.xlu0 %v880
  %v882 = vpop.xlane.xlu0 %881
  %v883 = vsel %vm864, %v845, 0.0
  %884 = vadd.xlane.f32.xlu0 %v883
  %v885 = vpop.xlane.xlu0 %884
  %v886 = vsel %vm864, %v846, 0.0
  %887 = vadd.xlane.f32.xlu0 %v886
  %v888 = vpop.xlane.xlu0 %887
  %v889 = vsel %vm864, %v847, 0.0
  %890 = vadd.xlane.f32.xlu0 %v889
  %v891 = vpop.xlane.xlu0 %890
  %v892 = vsel %vm864, %v848, 0.0
  %893 = vadd.xlane.f32.xlu0 %v892
  %v894 = vpop.xlane.xlu0 %893
  %v895 = vsel %vm864, %v849, 0.0
  %896 = vadd.xlane.f32.xlu0 %v895
  %v897 = vpop.xlane.xlu0 %896
  %v898 = vsel %vm864, %v850, 0.0
  %899 = vadd.xlane.f32.xlu0 %v898
  %v900 = vpop.xlane.xlu0 %899
  %v901 = vsel %vm864, %v851, 0.0
  %902 = vadd.xlane.f32.xlu0 %v901
  %v903 = vpop.xlane.xlu0 %902
  %v904 = vsel %vm864, %v852, 0.0
  %905 = vadd.xlane.f32.xlu0 %v904
  %v906 = vpop.xlane.xlu0 %905
  %v907 = vsel %vm864, %v853, 0.0
  %908 = vadd.xlane.f32.xlu0 %v907
  %v909 = vpop.xlane.xlu0 %908
  %v910 = vsel %vm864, %v854, 0.0
  %911 = vadd.xlane.f32.xlu0 %v910
  %v912 = vpop.xlane.xlu0 %911
  %v913 = vsel %vm864, %v855, 0.0
  %914 = vadd.xlane.f32.xlu0 %v913
  %v915 = vpop.xlane.xlu0 %914
  %v916 = vsel %vm864, %v856, 0.0
  %917 = vadd.xlane.f32.xlu0 %v916
  %v918 = vpop.xlane.xlu0 %917
  %v919 = vsel %vm864, %v857, 0.0
  %920 = vadd.xlane.f32.xlu0 %v919
  %v921 = vpop.xlane.xlu0 %920
  %v922 = vsel %vm864, %v858, 0.0
  %923 = vadd.xlane.f32.xlu0 %v922
  %v924 = vpop.xlane.xlu0 %923
  %v925 = vsel %vm864, %v859, 0.0
  %926 = vadd.xlane.f32.xlu0 %v925
  %v927 = vpop.xlane.xlu0 %926
  %v928 = vsel %vm864, %v860, 0.0
  %929 = vadd.xlane.f32.xlu0 %v928
  %v930 = vpop.xlane.xlu0 %929
  %v931 = vsel %vm864, %v861, 0.0
  %932 = vadd.xlane.f32.xlu0 %v931
  %v933 = vpop.xlane.xlu0 %932
  %v934 = vsel %vm864, %v862, 0.0
  %935 = vadd.xlane.f32.xlu0 %v934
  %v936 = vpop.xlane.xlu0 %935
  %v937 = vsel %vm864, %v863, 0.0
  %938 = vadd.xlane.f32.xlu0 %v937
  %v939 = vpop.xlane.xlu0 %938
  %vm940 = vcmask 7168
  %941 = vst.msk [vmem:[%s3] sm:$0xff] %vm940, %v867
  %942 = vst.msk [vmem:[%s3 + $0x8] sm:$0xff] %vm940, %v870
  %943 = vst.msk [vmem:[%s3 + $0x10] sm:$0xff] %vm940, %v873
  %944 = vst.msk [vmem:[%s3 + $0x18] sm:$0xff] %vm940, %v876
  %945 = vst.msk [vmem:[%s3 + $0x20] sm:$0xff] %vm940, %v879
  %946 = vst.msk [vmem:[%s3 + $0x28] sm:$0xff] %vm940, %v882
  %947 = vst.msk [vmem:[%s3 + $0x30] sm:$0xff] %vm940, %v885
  %948 = vst.msk [vmem:[%s3 + $0x38] sm:$0xff] %vm940, %v888
  %949 = vst.msk [vmem:[%s3 + $0x40] sm:$0xff] %vm940, %v891
  %950 = vst.msk [vmem:[%s3 + $0x48] sm:$0xff] %vm940, %v894
  %951 = vst.msk [vmem:[%s3 + $0x50] sm:$0xff] %vm940, %v897
  %952 = vst.msk [vmem:[%s3 + $0x58] sm:$0xff] %vm940, %v900
  %953 = vst.msk [vmem:[%s3 + $0x60] sm:$0xff] %vm940, %v903
  %954 = vst.msk [vmem:[%s3 + $0x68] sm:$0xff] %vm940, %v906
  %955 = vst.msk [vmem:[%s3 + $0x70] sm:$0xff] %vm940, %v909
  %956 = vst.msk [vmem:[%s3 + $0x78] sm:$0xff] %vm940, %v912
  %957 = vst.msk [vmem:[%s3 + $0x80] sm:$0xff] %vm940, %v915
  %958 = vst.msk [vmem:[%s3 + $0x88] sm:$0xff] %vm940, %v918
  %959 = vst.msk [vmem:[%s3 + $0x90] sm:$0xff] %vm940, %v921
  %960 = vst.msk [vmem:[%s3 + $0x98] sm:$0xff] %vm940, %v924
  %961 = vst.msk [vmem:[%s3 + $0xa0] sm:$0xff] %vm940, %v927
  %962 = vst.msk [vmem:[%s3 + $0xa8] sm:$0xff] %vm940, %v930
  %963 = vst.msk [vmem:[%s3 + $0xb0] sm:$0xff] %vm940, %v933
  %964 = vst.msk [vmem:[%s3 + $0xb8] sm:$0xff] %vm940, %v936
  %965 = vst.msk [vmem:[%s3 + $0xc0] sm:$0xff] %vm940, %v939
  // Predicated region
  $region14: #{tpu_custom_call.1} parent=0 // pred_check
    _
  $region15: #{tpu_custom_call.1} parent=0 // pred_check_branch
    %967 = sbr.rel (0) target = $region17
  $region16: #{tpu_custom_call.1} parent=0 // pred_region
    _
  $region17: #{tpu_custom_call.1} parent=0 // pred_fallthru
    _
  // Predicated region
  $region18: #{tpu_custom_call.1} parent=0 // pred_check
    _
  $region19: #{tpu_custom_call.1} parent=0 // pred_check_branch
    %969 = sbr.rel (0) target = $region21
  $region20: #{tpu_custom_call.1} parent=0 // pred_region
    _
  $region21: #{tpu_custom_call.1} parent=0 // pred_fallthru
    _

</llo_original>
